<compile_context>
chip_gen: v7x
topology: tpu7x:2x2x1
jax: 0.10.0
libtpu: 0.0.40
codegen_flags: <defaults>
</compile_context>

<pallas_src>
import functools

import jax
import jax.numpy as jnp
from jax.experimental import pallas as pl
from jax.experimental.pallas import tpu as pltpu


# ---------------------------------------------------------------------------
# Pallas kernel: HBM->HBM DMA of one chunk of memory[layer].
#   mem_ref : raw HBM ref, shape (num_layers, rows, cols)
#   out_ref : raw HBM ref, shape (rows, cols)
# ---------------------------------------------------------------------------
def _stm_copy_kernel(layer_ref, mem_ref, out_ref, sem, *, chunk_rows):
    i = pl.program_id(0)
    layer = layer_ref[0]
    row0 = pl.multiple_of(i * chunk_rows, chunk_rows)
    copy = pltpu.make_async_copy(
        mem_ref.at[layer, pl.ds(row0, chunk_rows)],
        out_ref.at[pl.ds(row0, chunk_rows)],
        sem,
    )
    copy.start()
    copy.wait()


def _flat_inner_shape(batch, stm_size, embed_dim):
    """Lane-dense 2-D view of one layer slab when possible."""
    flat = batch * stm_size * embed_dim
    if flat % 128 == 0:
        return (flat // 128, 128)
    return (batch * stm_size, embed_dim)


def _num_chunks(rows, row_bytes):
    """Split the copy across a parallel grid only when chunks stay >= 512 KiB."""
    min_chunk_bytes = 512 * 1024
    for cand in (8, 4, 2):
        if rows % cand == 0 and (rows // cand) * row_bytes >= min_chunk_bytes:
            return cand
    return 1


_PALLAS_MIN_BYTES = 1 << 20  # below this, XLA's dynamic slice beats a kernel launch


@functools.partial(jax.jit, static_argnames=("force_pallas",))
def stm_forward(memory: jax.Array, layer, *, force_pallas: bool = False) -> jax.Array:
    """Equivalent of ShortTermMemory.forward(layer) == memory[layer]."""
    num_layers, batch, stm_size, embed_dim = memory.shape
    layer = jnp.clip(jnp.asarray(layer, jnp.int32), 0, num_layers - 1)

    layer_bytes = batch * stm_size * embed_dim * memory.dtype.itemsize
    if layer_bytes < _PALLAS_MIN_BYTES and not force_pallas:
        # Tiny slab: skip Pallas, let XLA fuse a dynamic slice.
        return jax.lax.dynamic_index_in_dim(memory, layer, axis=0, keepdims=False)

    rows, cols = _flat_inner_shape(batch, stm_size, embed_dim)
    row_bytes = cols * memory.dtype.itemsize
    n_chunks = _num_chunks(rows, row_bytes)
    chunk_rows = rows // n_chunks

    mem_flat = memory.reshape(num_layers, rows, cols)  # contiguous bitcast reshape
    layer_arr = layer.reshape((1,))

    grid_spec = pltpu.PrefetchScalarGridSpec(
        num_scalar_prefetch=1,                         # layer index -> SMEM
        grid=(n_chunks,),
        in_specs=[pl.BlockSpec(memory_space=pl.ANY)],  # memory stays in HBM
        out_specs=pl.BlockSpec(memory_space=pl.ANY),   # output written by DMA
        scratch_shapes=[pltpu.SemaphoreType.DMA],
    )

    out_flat = pl.pallas_call(
        functools.partial(_stm_copy_kernel, chunk_rows=chunk_rows),
        out_shape=jax.ShapeDtypeStruct((rows, cols), memory.dtype),
        grid_spec=grid_spec,
        compiler_params=pltpu.CompilerParams(
            dimension_semantics=(("parallel",) if n_chunks > 1 else ("arbitrary",)),
        ),
    )(layer_arr, mem_flat)

    return out_flat.reshape(batch, stm_size, embed_dim)


# ---------------------------------------------------------------------------
# Deterministic parameter init mirroring ShortTermMemory._init_tensor.
# ---------------------------------------------------------------------------
def init_stm_memory(key, num_layers, embed_dim, stm_size, batch_size=1,
                    init_type="normal", dtype=jnp.float32):
    shape = (num_layers, batch_size, stm_size, embed_dim)
    if init_type == "normal":
        return 0.02 * jax.random.normal(key, shape, dtype=dtype)
    elif init_type == "standard":
        return jax.random.normal(key, shape, dtype=dtype)
    elif init_type == "uniform":
        return 0.02 * jax.random.uniform(key, shape, dtype=dtype)
    elif init_type == "ones":
        return jnp.ones(shape, dtype=dtype)
    else:
        return jnp.zeros(shape, dtype=dtype)


# TODO(synk): stateful methods (update_layer, reset, resize, batched_memory, ...)
# are host-side buffer management, not kernels; only forward() is implemented here.

if __name__ == "__main__":
    # Small shapes consistent with the module (as if batched_memory(2) was used).
    num_layers = 4
    embed_dim = 32
    stm_size = 8
    batch_size = 2

    key = jax.random.PRNGKey(0)
    memory = init_stm_memory(key, num_layers, embed_dim, stm_size,
                             batch_size=batch_size, init_type="normal")

    layer = jnp.int32(2)

    # Force the Pallas HBM->HBM DMA path (toy memory is below the size threshold).
    out = jax.block_until_ready(stm_forward(memory, layer, force_pallas=True))
    ref = memory[2]
    assert out.shape == (batch_size, stm_size, embed_dim)
    assert jnp.array_equal(out, ref), "Pallas STM forward mismatch"

    # Size-thresholded dispatch path must agree as well.
    out2 = jax.block_until_ready(stm_forward(memory, layer))
    assert jnp.array_equal(out2, ref), "Dispatch path mismatch"

    print("KERNEL_OK")
</pallas_src>

<mosaic_0001>
module attributes {stable_mosaic.version = 11 : i64} {
  func.func @_stm_copy_kernel(%arg0: i32, %arg1: memref<1xi32, #tpu.memory_space<smem>>, %arg2: memref<4x4x128xf32, #tpu.memory_space<any>>, %arg3: memref<4x128xf32, #tpu.memory_space<any>>, %arg4: memref<!tpu.dma_semaphore, #tpu.memory_space<semaphore_mem>>) attributes {dimension_semantics = [#tpu.dimension_semantics<arbitrary>], iteration_bounds = array<i64: 1>, scalar_prefetch = 1 : i64, scratch_operands = 1 : i64, tpu.core_type = #tpu.core_type<tc>, window_params = [{}, {}]} {
    %c0 = arith.constant 0 : index
    %0 = memref.load %arg1[%c0] : memref<1xi32, #tpu.memory_space<smem>>
    %c4_i32 = arith.constant 4 : i32
    %1 = arith.muli %arg0, %c4_i32 : i32
    %2 = tpu.assume_multiple %1, 4 : i32
    %c0_i32 = arith.constant 0 : i32
    %3 = tpu.memref_slice %arg2[%0, %2, %c0_i32] : memref<4x4x128xf32, #tpu.memory_space<any>> -> memref<1x4x128xf32, #tpu.memory_space<any>>
    %4 = tpu.memref_squeeze %3 : memref<1x4x128xf32, #tpu.memory_space<any>> -> memref<4x128xf32, #tpu.memory_space<any>>
    %c0_i32_0 = arith.constant 0 : i32
    %5 = tpu.memref_slice %arg3[%2, %c0_i32_0] : memref<4x128xf32, #tpu.memory_space<any>> -> memref<4x128xf32, #tpu.memory_space<any>>
    tpu.enqueue_dma source(%4 : memref<4x128xf32, #tpu.memory_space<any>>) target(%5 : memref<4x128xf32, #tpu.memory_space<any>>) target_semaphore(%arg4 : memref<!tpu.dma_semaphore, #tpu.memory_space<semaphore_mem>>)
    %c0_i32_1 = arith.constant 0 : i32
    %6 = tpu.memref_slice %arg2[%0, %2, %c0_i32_1] : memref<4x4x128xf32, #tpu.memory_space<any>> -> memref<1x4x128xf32, #tpu.memory_space<any>>
    %7 = tpu.memref_squeeze %6 : memref<1x4x128xf32, #tpu.memory_space<any>> -> memref<4x128xf32, #tpu.memory_space<any>>
    %c0_i32_2 = arith.constant 0 : i32
    %8 = tpu.memref_slice %arg3[%2, %c0_i32_2] : memref<4x128xf32, #tpu.memory_space<any>> -> memref<4x128xf32, #tpu.memory_space<any>>
    tpu.wait_dma2 semaphore(%arg4 : memref<!tpu.dma_semaphore, #tpu.memory_space<semaphore_mem>>) src(%7 : memref<4x128xf32, #tpu.memory_space<any>>) dst(%8 : memref<4x128xf32, #tpu.memory_space<any>>)
    return
  }
}

</mosaic_0001>

<llo_original>
// kernel: stm_forward.1
$region0: #{stm_forward.1}
  #allocation0 [shape = 'u32[]', space=smem, size = 0x4, offset = 0x4, fixed_abs, tag = 'smem constant byte address 0x4 - core index']
  #allocation1 [shape = 'u32[144,128]{1,0:T(1,128)}', space=vmem, size = 0x12000, scoped, tag = 'internal scratch']
  #allocation2 [shape = 's32[1]{0}', space=sflag, size = 0x4, scoped, tag = 'scratch operand']
  #allocation3 [shape = 's32[1]{0}', space=sflag, size = 0x4, scoped, tag = 'scoped memory for stm_forward.1']
  #allocation4 [shape = 's32[1]{0:T(128)S(6)}', space=smem, size = 0x200, scoped, tag = 'prefetched SMEM operand 0']
  #allocation5 [shape = 's32[]', space=sflag, size = 0x4, offset = 0, fixed_abs, tag = 'sflag constant byte address 0x0 - dummy sync flag']
  %s0 = inlined_call_operand.<no memory space> [shape: s32[1], index: 0, kind: input, shape index: {}]
  %s1 = inlined_call_operand.vmem [shape: f32[4,4,128], index: 1, kind: input, shape index: {}]
  %s2 = inlined_call_operand.vmem [shape: f32[4,128], index: 2, kind: output, shape index: {}]
  %s3 = sld [smem:[#allocation0]]
  $region32: #{stm_forward.1} parent=0
    _
  %s5 = ssub.s32 1, %s3
  %s6 = scalar_select 0, %s5, %s3
  %7 = sst [smem:[#allocation4]] %s0
  %s8 = sld [smem:[#allocation4]]
  %s9 = smul.u32 0, 4
  %s10 = smul.u32 %s8, 4
  %s11 = sadd.s32 %s9, %s10
  %s12 = scalar_lea.vmem %s1, %s11
  %s13 = scalar_lea.vmem %s2, %s9
  %p15 = scmp.lt.u32.totalorder 4, 8
  %p16 = pneg %p15
  // Predicated region
  $region2: #{stm_forward.1} parent=0 // pred_check
    _
  $region3: #{stm_forward.1} parent=0 // pred_check_branch
    %18 = sbr.rel (%p15) target = $region5
  $region4: #{stm_forward.1} parent=0 // pred_region
    %s33 = sand.u32 4, 7
    %p34 = scmp.eq.s32.totalorder %s33, 0
    %p35 = pneg %p34
    // Predicated region
    $region17: #{stm_forward.1} parent=4 // pred_check
      _
    $region18: #{stm_forward.1} parent=4 // pred_check_branch
      %37 = sbr.rel (%p34) target = $region20
    $region19: #{stm_forward.1} parent=4 // pred_region
      %s38 = sand.u32 4, 7
      %s39 = ssub.s32 4, %s38
      %s40 = scalar_lea.vmem %s12, %s39
      %s41 = ssub.s32 4, %s38
      %s42 = scalar_lea.vmem %s13, %s41
      %s43 = sshllo.u32 0, %s38
      loop: start=0, step=1, limit=1
      $region21: #{stm_forward.1} parent=19 // loop_pre_header
        _
      $region22: #{stm_forward.1} parent=19 // loop_header
        %s45 = sphi 0, %s49
        %p46 = scmp.ge.s32.totalorder %s45, 1
        %s50 = sphi %s40, %s40
        %s51 = sphi %s42, %s42
      $region23: #{stm_forward.1} parent=19 // loop_header_branch
        %48 = sbr.rel (%p46) target = $region27
      $region24: #{stm_forward.1} parent=19 // loop_body
        %v52 = vld [vmem:[%s50] sm:%s43]
        %53 = vst [vmem:[%s51] sm:%s43] %v52
      $region25: #{stm_forward.1} parent=19 // loop_footer
        %s49 = sadd.s32 1, %s45
      $region26: #{stm_forward.1} parent=19 // loop_footer_branch
        %44 = sbr.rel target = $region22
      $region27: #{stm_forward.1} parent=19 // loop_exit
        _
    $region20: #{stm_forward.1} parent=4 // pred_fallthru
      _
  $region5: #{stm_forward.1} parent=0 // pred_fallthru
    _
  // Predicated region
  $region6: #{stm_forward.1} parent=0 // pred_check
    %p19 = pneg %p15
  $region7: #{stm_forward.1} parent=0 // pred_check_branch
    %21 = sbr.rel (%p19) target = $region9
  $region8: #{stm_forward.1} parent=0 // pred_region
    %s22 = sshllo.u32 0, 4
    loop: start=0, step=1, limit=1
    $region10: #{stm_forward.1} parent=8 // loop_pre_header
      _
    $region11: #{stm_forward.1} parent=8 // loop_header
      %s24 = sphi 0, %s28
      %p25 = scmp.ge.s32.totalorder %s24, 1
      %s29 = sphi %s12, %s12
      %s30 = sphi %s13, %s13
    $region12: #{stm_forward.1} parent=8 // loop_header_branch
      %27 = sbr.rel (%p25) target = $region16
    $region13: #{stm_forward.1} parent=8 // loop_body
      %v31 = vld [vmem:[%s29] sm:%s22]
      %32 = vst [vmem:[%s30] sm:%s22] %v31
    $region14: #{stm_forward.1} parent=8 // loop_footer
      %s28 = sadd.s32 1, %s24
    $region15: #{stm_forward.1} parent=8 // loop_footer_branch
      %23 = sbr.rel target = $region11
    $region16: #{stm_forward.1} parent=8 // loop_exit
      _
  $region9: #{stm_forward.1} parent=0 // pred_fallthru
    _
  // Predicated region
  $region28: #{stm_forward.1} parent=0 // pred_check
    _
  $region29: #{stm_forward.1} parent=0 // pred_check_branch
    %56 = sbr.rel (0) target = $region31
  $region30: #{stm_forward.1} parent=0 // pred_region
    %57 = vsyncadd [#allocation2], 64
  $region31: #{stm_forward.1} parent=0 // pred_fallthru
    _
  %s58 = smul.u32 4, 1
  %s59 = sshll.u32 %s58, 4
  %60 = dma.done [#allocation2], %s59
  %61 = vsyncmov [#allocation2]
  %s62 = vpop.sfrf %61
  %p63 = scmp.eq.s32.totalorder %s62, 0
  %p64 = pneg %p63
  %66 = shalt.err (%p64)

</llo_original>
